<compile_context>
chip_gen: v7x
topology: tpu7x:2x2x1
jax: 0.10.0
libtpu: 0.0.40
codegen_flags: <defaults>
</compile_context>

<pallas_src>
import functools
import math

import jax
import jax.numpy as jnp
import numpy as np
from jax.experimental import pallas as pl
from jax.experimental.pallas import tpu as pltpu


def _round_up(x, m):
    return (x + m - 1) // m * m


def _sigmoid(x):
    return 1.0 / (1.0 + jnp.exp(-x))


# ----------------------------------------------------------------------------
# Kernel 1: fused Linear (+ bias, optional ReLU)
# ----------------------------------------------------------------------------
def _linear_kernel(x_ref, w_ref, b_ref, o_ref, *, apply_relu):
    y = jnp.dot(x_ref[...], w_ref[...], preferred_element_type=jnp.float32)
    y = y + b_ref[...]
    if apply_relu:
        y = jnp.maximum(y, 0.0)
    o_ref[...] = y.astype(o_ref.dtype)


def linear(x2d, w, b, *, apply_relu):
    """x2d: (M, K) f32; w: (N, K) torch layout; b: (N,)."""
    M, K = x2d.shape
    N = w.shape[0]
    wt = jnp.transpose(w)                     # (K, N) for MXU-friendly dot
    b2 = b.reshape(1, N)

    # Tile the row axis; pad so the block evenly divides the array.
    TM = 512 if M >= 512 else _round_up(M, 8)
    Mp = _round_up(M, TM)
    xp = x2d if Mp == M else jnp.pad(x2d, ((0, Mp - M), (0, 0)))

    cost = pl.CostEstimate(
        flops=2 * Mp * K * N,
        transcendentals=0,
        bytes_accessed=4 * (Mp * K + K * N + N + Mp * N),
    )

    out = pl.pallas_call(
        functools.partial(_linear_kernel, apply_relu=apply_relu),
        out_shape=jax.ShapeDtypeStruct((Mp, N), x2d.dtype),
        grid=(Mp // TM,),
        in_specs=[
            pl.BlockSpec((TM, K), lambda i: (i, 0)),
            pl.BlockSpec((K, N), lambda i: (0, 0)),
            pl.BlockSpec((1, N), lambda i: (0, 0)),
        ],
        out_specs=pl.BlockSpec((TM, N), lambda i: (i, 0)),
        compiler_params=pltpu.CompilerParams(
            dimension_semantics=("parallel",)),
        cost_estimate=cost,
    )(xp, wt, b2)
    return out[:M] if Mp != M else out


# ----------------------------------------------------------------------------
# Kernel 2a: one LSTM layer (grid over time; h/c persist in VMEM scratch)
# ----------------------------------------------------------------------------
def _lstm_step_kernel(x_ref, h0_ref, c0_ref, wih_ref, whh_ref, b_ref,
                      seq_ref, hT_ref, cT_ref, h_scr, c_scr):
    t = pl.program_id(0)

    @pl.when(t == 0)
    def _():
        h_scr[...] = h0_ref[...].astype(jnp.float32)
        c_scr[...] = c0_ref[...].astype(jnp.float32)

    x_t = x_ref[0].astype(jnp.float32)        # (B, D_in)
    h_prev = h_scr[...]                       # (B, H)
    c_prev = c_scr[...]

    def gate(k):
        return (jnp.dot(x_t, wih_ref[k], preferred_element_type=jnp.float32)
                + jnp.dot(h_prev, whh_ref[k], preferred_element_type=jnp.float32)
                + b_ref[k])                   # (B, H)

    # PyTorch gate order: i, f, g, o
    i_g = _sigmoid(gate(0))
    f_g = _sigmoid(gate(1))
    g_g = jnp.tanh(gate(2))
    o_g = _sigmoid(gate(3))

    c_new = f_g * c_prev + i_g * g_g
    h_new = o_g * jnp.tanh(c_new)

    h_scr[...] = h_new
    c_scr[...] = c_new
    seq_ref[0] = h_new.astype(seq_ref.dtype)
    hT_ref[...] = h_new.astype(hT_ref.dtype)
    cT_ref[...] = c_new.astype(cT_ref.dtype)


def lstm_layer(x_tm, h0, c0, w_ih, w_hh, b_ih, b_hh):
    """x_tm: (T, B, D_in) time-major; w_ih: (4H, D_in); w_hh: (4H, H)."""
    T, B, Din = x_tm.shape
    H = w_hh.shape[1]
    # Stack per-gate, pre-transposed weights: (4, D_in, H) / (4, H, H).
    wih_t = jnp.transpose(w_ih.reshape(4, H, Din), (0, 2, 1))
    whh_t = jnp.transpose(w_hh.reshape(4, H, H), (0, 2, 1))
    bias = (b_ih + b_hh).reshape(4, 1, H)
    dt = x_tm.dtype

    seq, hT, cT = pl.pallas_call(
        _lstm_step_kernel,
        out_shape=(jax.ShapeDtypeStruct((T, B, H), dt),
                   jax.ShapeDtypeStruct((B, H), dt),
                   jax.ShapeDtypeStruct((B, H), dt)),
        grid=(T,),
        in_specs=[
            pl.BlockSpec((1, B, Din), lambda t: (t, 0, 0)),
            pl.BlockSpec((B, H), lambda t: (0, 0)),
            pl.BlockSpec((B, H), lambda t: (0, 0)),
            pl.BlockSpec((4, Din, H), lambda t: (0, 0, 0)),
            pl.BlockSpec((4, H, H), lambda t: (0, 0, 0)),
            pl.BlockSpec((4, 1, H), lambda t: (0, 0, 0)),
        ],
        out_specs=(pl.BlockSpec((1, B, H), lambda t: (t, 0, 0)),
                   pl.BlockSpec((B, H), lambda t: (0, 0)),
                   pl.BlockSpec((B, H), lambda t: (0, 0))),
        scratch_shapes=[pltpu.VMEM((B, H), jnp.float32),
                        pltpu.VMEM((B, H), jnp.float32)],
        compiler_params=pltpu.CompilerParams(
            dimension_semantics=("arbitrary",)),   # recurrence is sequential
    )(x_tm, h0, c0, wih_t, whh_t, bias)
    return seq, hT, cT


# ----------------------------------------------------------------------------
# Kernel 2b: one vanilla (tanh) RNN layer
# ----------------------------------------------------------------------------
def _rnn_step_kernel(x_ref, h0_ref, wih_ref, whh_ref, b_ref,
                     seq_ref, hT_ref, h_scr):
    t = pl.program_id(0)

    @pl.when(t == 0)
    def _():
        h_scr[...] = h0_ref[...].astype(jnp.float32)

    x_t = x_ref[0].astype(jnp.float32)
    z = (jnp.dot(x_t, wih_ref[...], preferred_element_type=jnp.float32)
         + jnp.dot(h_scr[...], whh_ref[...], preferred_element_type=jnp.float32)
         + b_ref[...])
    h_new = jnp.tanh(z)

    h_scr[...] = h_new
    seq_ref[0] = h_new.astype(seq_ref.dtype)
    hT_ref[...] = h_new.astype(hT_ref.dtype)


def rnn_layer(x_tm, h0, w_ih, w_hh, b_ih, b_hh):
    T, B, Din = x_tm.shape
    H = w_hh.shape[1]
    wih_t = jnp.transpose(w_ih)               # (Din, H)
    whh_t = jnp.transpose(w_hh)               # (H, H)
    bias = (b_ih + b_hh).reshape(1, H)
    dt = x_tm.dtype

    seq, hT = pl.pallas_call(
        _rnn_step_kernel,
        out_shape=(jax.ShapeDtypeStruct((T, B, H), dt),
                   jax.ShapeDtypeStruct((B, H), dt)),
        grid=(T,),
        in_specs=[
            pl.BlockSpec((1, B, Din), lambda t: (t, 0, 0)),
            pl.BlockSpec((B, H), lambda t: (0, 0)),
            pl.BlockSpec((Din, H), lambda t: (0, 0)),
            pl.BlockSpec((H, H), lambda t: (0, 0)),
            pl.BlockSpec((1, H), lambda t: (0, 0)),
        ],
        out_specs=(pl.BlockSpec((1, B, H), lambda t: (t, 0, 0)),
                   pl.BlockSpec((B, H), lambda t: (0, 0))),
        scratch_shapes=[pltpu.VMEM((B, H), jnp.float32)],
        compiler_params=pltpu.CompilerParams(
            dimension_semantics=("arbitrary",)),
    )(x_tm, h0, wih_t, whh_t, bias)
    return seq, hT


# ----------------------------------------------------------------------------
# Full RecurrentDNN forward (mirrors the PyTorch module)
# ----------------------------------------------------------------------------
def recurrent_dnn_forward(params, x, rec_prev, *, _type='lstm',
                          has_input_layer=True, pos_output=False):
    """x: (B, T, input_dim); rec_prev: (h0, c0) for 'lstm' or h0 for 'rnn'."""
    B, T, _ = x.shape

    if has_input_layer:
        w, b = params['input_layer']
        H = w.shape[0]
        x = linear(x.reshape(B * T, -1), w, b, apply_relu=True).reshape(B, T, H)

    xt = jnp.transpose(x, (1, 0, 2))          # time-major (T, B, D)

    if _type == 'lstm':
        h0, c0 = rec_prev
        h_fin, c_fin = [], []
        cur = xt
        for l, (w_ih, w_hh, b_ih, b_hh) in enumerate(params['rnn']):
            cur, hT, cT = lstm_layer(cur, h0[l], c0[l], w_ih, w_hh, b_ih, b_hh)
            h_fin.append(hT)
            c_fin.append(cT)
        rec_next = (jnp.stack(h_fin), jnp.stack(c_fin))
    elif _type == 'rnn':
        h0 = rec_prev
        h_fin = []
        cur = xt
        for l, (w_ih, w_hh, b_ih, b_hh) in enumerate(params['rnn']):
            cur, hT = rnn_layer(cur, h0[l], w_ih, w_hh, b_ih, b_hh)
            h_fin.append(hT)
        rec_next = jnp.stack(h_fin)
    else:
        raise ValueError('Incorrect RNN type')

    out = jnp.transpose(cur, (1, 0, 2))       # back to (B, T, H)
    H = out.shape[-1]
    y = out.reshape(B * T, H)
    for (w, b) in params['linears']:
        y = linear(y, w, b, apply_relu=True)
    w, b = params['output']
    y = linear(y, w, b, apply_relu=pos_output)
    return y.reshape(B, T, w.shape[0]), rec_next


# ----------------------------------------------------------------------------
# Parameter init (PyTorch-style uniform(-1/sqrt(fan), 1/sqrt(fan)))
# ----------------------------------------------------------------------------
def init_params(key, input_dim, hidden_dim, n_linear_layers, n_rec_layers,
                output_dim, _type='lstm', has_input_layer=True):
    kit = iter(jax.random.split(key, 64))

    def uni(shape, fan):
        bound = 1.0 / math.sqrt(fan)
        return jax.random.uniform(next(kit), shape, jnp.float32, -bound, bound)

    params = {}
    rnn_in = input_dim
    if has_input_layer:
        params['input_layer'] = (uni((hidden_dim, input_dim), input_dim),
                                 uni((hidden_dim,), input_dim))
        rnn_in = hidden_dim

    G = 4 if _type == 'lstm' else 1
    rnn, d_in = [], rnn_in
    for _ in range(n_rec_layers):
        rnn.append((uni((G * hidden_dim, d_in), hidden_dim),
                    uni((G * hidden_dim, hidden_dim), hidden_dim),
                    uni((G * hidden_dim,), hidden_dim),
                    uni((G * hidden_dim,), hidden_dim)))
        d_in = hidden_dim
    params['rnn'] = rnn

    params['linears'] = [(uni((hidden_dim, hidden_dim), hidden_dim),
                          uni((hidden_dim,), hidden_dim))
                         for _ in range(n_linear_layers)]
    params['output'] = (uni((output_dim, hidden_dim), hidden_dim),
                        uni((output_dim,), hidden_dim))
    return params


# ----------------------------------------------------------------------------
# Pure-JAX reference (for correctness checking)
# ----------------------------------------------------------------------------
def ref_forward(params, x, rec_prev, *, _type='lstm',
                has_input_layer=True, pos_output=False):
    HI = jax.lax.Precision.HIGHEST

    def lin(x2d, w, b):
        return jnp.dot(x2d, w.T, precision=HI) + b

    B, T, _ = x.shape
    if has_input_layer:
        w, b = params['input_layer']
        x = jax.nn.relu(lin(x.reshape(B * T, -1), w, b)).reshape(B, T, -1)
    cur = jnp.transpose(x, (1, 0, 2))

    if _type == 'lstm':
        h0, c0 = rec_prev
        hs, cs = [], []
        for l, (w_ih, w_hh, b_ih, b_hh) in enumerate(params['rnn']):
            H = w_hh.shape[1]

            def step(carry, x_t, w_ih=w_ih, w_hh=w_hh, b_ih=b_ih, b_hh=b_hh, H=H):
                h, c = carry
                g = (jnp.dot(x_t, w_ih.T, precision=HI) + b_ih
                     + jnp.dot(h, w_hh.T, precision=HI) + b_hh)
                i = jax.nn.sigmoid(g[:, :H])
                f = jax.nn.sigmoid(g[:, H:2 * H])
                gg = jnp.tanh(g[:, 2 * H:3 * H])
                o = jax.nn.sigmoid(g[:, 3 * H:])
                c = f * c + i * gg
                h = o * jnp.tanh(c)
                return (h, c), h

            (hT, cT), cur = jax.lax.scan(step, (h0[l], c0[l]), cur)
            hs.append(hT)
            cs.append(cT)
        rec = (jnp.stack(hs), jnp.stack(cs))
    else:
        h0 = rec_prev
        hs = []
        for l, (w_ih, w_hh, b_ih, b_hh) in enumerate(params['rnn']):

            def step(h, x_t, w_ih=w_ih, w_hh=w_hh, b_ih=b_ih, b_hh=b_hh):
                h = jnp.tanh(jnp.dot(x_t, w_ih.T, precision=HI) + b_ih
                             + jnp.dot(h, w_hh.T, precision=HI) + b_hh)
                return h, h

            hT, cur = jax.lax.scan(step, h0[l], cur)
            hs.append(hT)
        rec = jnp.stack(hs)

    out = jnp.transpose(cur, (1, 0, 2))
    y = out.reshape(B * T, -1)
    for (w, b) in params['linears']:
        y = jax.nn.relu(lin(y, w, b))
    w, b = params['output']
    y = lin(y, w, b)
    if pos_output:
        y = jax.nn.relu(y)
    return y.reshape(B, T, -1), rec


# ----------------------------------------------------------------------------
# Demo / self-check
# ----------------------------------------------------------------------------
if __name__ == "__main__":
    input_dim, hidden_dim, output_dim = 16, 32, 8
    n_rec_layers, n_linear_layers = 2, 1
    batch, seq = 2, 8

    root = jax.random.PRNGKey(0)
    k_pl, k_pr, k_x, k_h, k_c = jax.random.split(root, 5)

    x = jax.random.normal(k_x, (batch, seq, input_dim), jnp.float32)
    h0 = 0.1 * jax.random.normal(k_h, (n_rec_layers, batch, hidden_dim), jnp.float32)
    c0 = 0.1 * jax.random.normal(k_c, (n_rec_layers, batch, hidden_dim), jnp.float32)

    # ---- LSTM variant (default) ----
    p_lstm = init_params(k_pl, input_dim, hidden_dim, n_linear_layers,
                         n_rec_layers, output_dim, _type='lstm')
    out, (hN, cN) = recurrent_dnn_forward(p_lstm, x, (h0, c0), _type='lstm',
                                          has_input_layer=True, pos_output=False)
    out = jax.block_until_ready(out)
    assert out.shape == (batch, seq, output_dim)

    ref_out, (rh, rc) = ref_forward(p_lstm, x, (h0, c0), _type='lstm',
                                    has_input_layer=True, pos_output=False)
    np.testing.assert_allclose(np.asarray(out), np.asarray(ref_out), rtol=2e-3, atol=2e-3)
    np.testing.assert_allclose(np.asarray(hN), np.asarray(rh), rtol=2e-3, atol=2e-3)
    np.testing.assert_allclose(np.asarray(cN), np.asarray(rc), rtol=2e-3, atol=2e-3)

    # ---- vanilla RNN variant (exercise _type='rnn' and pos_output=True) ----
    p_rnn = init_params(k_pr, input_dim, hidden_dim, n_linear_layers,
                        n_rec_layers, output_dim, _type='rnn')
    out_r, hN_r = recurrent_dnn_forward(p_rnn, x, h0, _type='rnn',
                                        has_input_layer=True, pos_output=True)
    out_r = jax.block_until_ready(out_r)
    ref_out_r, rh_r = ref_forward(p_rnn, x, h0, _type='rnn',
                                  has_input_layer=True, pos_output=True)
    np.testing.assert_allclose(np.asarray(out_r), np.asarray(ref_out_r), rtol=2e-3, atol=2e-3)
    np.testing.assert_allclose(np.asarray(hN_r), np.asarray(rh_r), rtol=2e-3, atol=2e-3)

    print("KERNEL_OK")
</pallas_src>

<mosaic_0001>
module attributes {stable_mosaic.version = 11 : i64} {
  func.func @_linear_kernel(%arg0: i32, %arg1: memref<16x16xf32, #tpu.memory_space<vmem>>, %arg2: memref<16x32xf32, #tpu.memory_space<vmem>>, %arg3: memref<1x32xf32, #tpu.memory_space<vmem>>, %arg4: memref<16x32xf32, #tpu.memory_space<vmem>>) attributes {dimension_semantics = [#tpu.dimension_semantics<parallel>], iteration_bounds = array<i64: 1>, scalar_prefetch = 0 : i64, scratch_operands = 0 : i64, tpu.core_type = #tpu.core_type<tc>, window_params = [{transform_indices = @transform_0, window_bounds = array<i64: 16, 16>}, {pipeline_mode = #tpu.pipeline_mode<synchronous>, transform_indices = @transform_1, window_bounds = array<i64: 16, 32>}, {pipeline_mode = #tpu.pipeline_mode<synchronous>, transform_indices = @transform_2, window_bounds = array<i64: 1, 32>}, {transform_indices = @transform_3, window_bounds = array<i64: 16, 32>}]} {
    %c0 = arith.constant 0 : index
    %c0_0 = arith.constant 0 : index
    %0 = vector.load %arg1[%c0, %c0_0] : memref<16x16xf32, #tpu.memory_space<vmem>>, vector<16x16xf32>
    %c0_1 = arith.constant 0 : index
    %c0_2 = arith.constant 0 : index
    %1 = vector.load %arg2[%c0_1, %c0_2] : memref<16x32xf32, #tpu.memory_space<vmem>>, vector<16x32xf32>
    %cst = arith.constant dense<0.000000e+00> : vector<16x32xf32>
    %2 = tpu.matmul %0, %1, %cst {dimension_numbers = #tpu.dot_dimension_numbers<[1], [0], [0], [1], [0, 0, 1, 1], [], []>} : vector<16x16xf32>, vector<16x32xf32>, vector<16x32xf32> -> vector<16x32xf32>
    %c0_3 = arith.constant 0 : index
    %c0_4 = arith.constant 0 : index
    %3 = vector.load %arg3[%c0_3, %c0_4] : memref<1x32xf32, #tpu.memory_space<vmem>>, vector<1x32xf32>
    %4 = vector.broadcast %3 : vector<1x32xf32> to vector<16x32xf32>
    %5 = arith.addf %2, %4 : vector<16x32xf32>
    %cst_5 = arith.constant 0.000000e+00 : f32
    %6 = vector.broadcast %cst_5 : f32 to vector<16x32xf32>
    %7 = arith.maximumf %5, %6 : vector<16x32xf32>
    %c0_6 = arith.constant 0 : index
    %c0_7 = arith.constant 0 : index
    %8 = vector.load %arg4[%c0_6, %c0_7] : memref<16x32xf32, #tpu.memory_space<vmem>>, vector<16x32xf32>
    tpu.vector_store %arg4[%c0_6, %c0_7], %7 {strides = array<i32>} : memref<16x32xf32, #tpu.memory_space<vmem>>, vector<16x32xf32>,
    return
  }
  func.func @transform_0(%arg0: i32) -> (i32, i32) {
    %c0_i32 = arith.constant 0 : i32
    %c0_i32_0 = arith.constant 0 : i32
    return %arg0, %c0_i32 : i32, i32
  }
  func.func @transform_1(%arg0: i32) -> (i32, i32) {
    %c0_i32 = arith.constant 0 : i32
    %c0_i32_0 = arith.constant 0 : i32
    %c0_i32_1 = arith.constant 0 : i32
    return %c0_i32, %c0_i32_0 : i32, i32
  }
  func.func @transform_2(%arg0: i32) -> (i32, i32) {
    %c0_i32 = arith.constant 0 : i32
    %c0_i32_0 = arith.constant 0 : i32
    %c0_i32_1 = arith.constant 0 : i32
    return %c0_i32, %c0_i32_0 : i32, i32
  }
  func.func @transform_3(%arg0: i32) -> (i32, i32) {
    %c0_i32 = arith.constant 0 : i32
    %c0_i32_0 = arith.constant 0 : i32
    return %arg0, %c0_i32 : i32, i32
  }
}

</mosaic_0001>

<llo_original>
// kernel: tpu_custom_call.1
$region0: #{tpu_custom_call.1}
  #allocation0 [shape = 'u32[]', space=smem, size = 0x4, offset = 0x4, fixed_abs, tag = 'smem constant byte address 0x4 - core index']
  #allocation1 [shape = 'u32[144,128]{1,0:T(1,128)}', space=vmem, size = 0x12000, scoped, tag = 'internal scratch']
  %s0 = inlined_call_operand.hbm [shape: f32[16,16], index: 0, kind: input, shape index: {}]
  %s1 = inlined_call_operand.hbm [shape: f32[16,32], index: 1, kind: input, shape index: {}]
  %s2 = inlined_call_operand.vmem [shape: f32[1,32], index: 2, kind: input, shape index: {}]
  %s3 = inlined_call_operand.hbm [shape: f32[16,32], index: 3, kind: output, shape index: {}]
  %s4 = sld [smem:[#allocation0]]
  $region30: #{tpu_custom_call.1} parent=0
    _
  %s6 = ssub.s32 1, %s4
  %s7 = scalar_select 0, %s6, %s4
  $region1: #{tpu_custom_call.1} parent=0
    #allocation2 [shape = 'u8[8192]{0}', space=vmem, size = 0x2000, scoped, tag = 'input window, operand 0, single buffered']
    #allocation3 [shape = 's32[1]{0}', space=sflag, size = 0x4, scoped, tag = 'scoped memory for tpu_custom_call.1']
    #allocation4 [shape = 's32[1]{0}', space=sflag, size = 0x4, scoped, tag = 'scoped memory for tpu_custom_call.1']
    #allocation5 [shape = 'u8[8192]{0}', space=vmem, size = 0x2000, scoped, tag = 'input window, operand 1, single buffered']
    #allocation6 [shape = 's32[1]{0}', space=sflag, size = 0x4, scoped, tag = 'scoped memory for tpu_custom_call.1']
    #allocation7 [shape = 'u8[8192]{0}', space=vmem, size = 0x2000, scoped, tag = 'output window, operand 0, single buffered']
    %8 = vsyncpa [#allocation3], 0
    %9 = vsyncpa [#allocation6], 0
    %10 = vsyncpa [#allocation4], 0
    // Predicated region
    $region2: #{tpu_custom_call.1} parent=1 // pred_check
      _
    $region3: #{tpu_custom_call.1} parent=1 // pred_check_branch
      %12 = sbr.rel (0) target = $region5
    $region4: #{tpu_custom_call.1} parent=1 // pred_region
      %s14 = ssub.s32 256, 256
      %15 = vsyncadd [#allocation3], %s14
      %s16 = sshll.u32 [#allocation2], 4
      %s17 = int_to_ptr.vmem [resolvable:$true] %s16
      %22 = dma.hbm_to_vmem [thread:$0]  %s0, 256, %s17, [#allocation3], 128, 128, 8
    $region5: #{tpu_custom_call.1} parent=1 // pred_fallthru
      _
    // Predicated region
    $region6: #{tpu_custom_call.1} parent=1 // pred_check
      _
    $region7: #{tpu_custom_call.1} parent=1 // pred_check_branch
      %24 = sbr.rel (0) target = $region9
    $region8: #{tpu_custom_call.1} parent=1 // pred_region
      %s26 = ssub.s32 256, 256
      %27 = vsyncadd [#allocation6], %s26
      %s28 = sshll.u32 [#allocation5], 4
      %s29 = int_to_ptr.vmem [resolvable:$true] %s28
      %34 = dma.hbm_to_vmem [thread:$0]  %s1, 256, %s29, [#allocation6], 128, 128, 8
    $region9: #{tpu_custom_call.1} parent=1 // pred_fallthru
      _
    // Predicated region
    $region10: #{tpu_custom_call.1} parent=1 // pred_check
      _
    $region11: #{tpu_custom_call.1} parent=1 // pred_check_branch
      %36 = sbr.rel (0) target = $region13
    $region12: #{tpu_custom_call.1} parent=1 // pred_region
      _
    $region13: #{tpu_custom_call.1} parent=1 // pred_fallthru
      _
    // Predicated region
    $region14: #{tpu_custom_call.1} parent=1 // pred_check
      _
    $region15: #{tpu_custom_call.1} parent=1 // pred_check_branch
      %38 = sbr.rel (0) target = $region17
    $region16: #{tpu_custom_call.1} parent=1 // pred_region
      %39 = dma.done [#allocation3], 256
    $region17: #{tpu_custom_call.1} parent=1 // pred_fallthru
      _
    // Predicated region
    $region18: #{tpu_custom_call.1} parent=1 // pred_check
      _
    $region19: #{tpu_custom_call.1} parent=1 // pred_check_branch
      %41 = sbr.rel (0) target = $region21
    $region20: #{tpu_custom_call.1} parent=1 // pred_region
      %42 = dma.done [#allocation6], 256
    $region21: #{tpu_custom_call.1} parent=1 // pred_fallthru
      _
    %v43 = vld [vmem:[#allocation2] sm:$0xff]
    %v44 = vld [vmem:[#allocation2 + $0x8] sm:$0xff]
    %v45 = vld [vmem:[#allocation5] sm:$0xff]
    %v46 = vld [vmem:[#allocation5 + $0x8] sm:$0xff]
    %v47 = vld [vmem:[%s2] sm:$0x1]
    %v49 = vlaneseq
    %v50 = vshrl.u32 %v49, 7
    %v51 = vsub.s32 0, %v50
    %v52 = vrot.slane %v47, %v51
    %vm54 = vcmask 130048
    %v56 = vsel %vm54, %v43, 0
    %v59 = vsel %vm54, %v44, 0
    %61 = vmatprep.subr.mxu0 0.0
    %62 = vmatpush1.msra.mxu0 %v45
    %63 = vmatprep.subr.mxu0 0.0
    %64 = vmatpush1.msra.mxu0 %v46
    %65 = vmatprep.subr.mxu0 0.0
    %66 = vmatpush1.msra.mxu0 0.0
    %67 = vmatprep.subr.mxu0 0.0
    %68 = vmatpush1.msra.mxu0 0.0
    %69 = vmatprep.subr.mxu0 0.0
    %70 = vmatpush1.msra.mxu0 0.0
    %71 = vmatprep.subr.mxu0 0.0
    %72 = vmatpush1.msra.mxu0 0.0
    %73 = vmatprep.subr.mxu0 0.0
    %74 = vmatpush1.msra.mxu0 0.0
    %75 = vmatprep.subr.mxu0 0.0
    %76 = vmatpush1.msra.mxu0 0.0
    %77 = vmatprep.subr.mxu0 0.0
    %78 = vmatpush1.msra.mxu0 0.0
    %79 = vmatprep.subr.mxu0 0.0
    %80 = vmatpush1.msra.mxu0 0.0
    %81 = vmatprep.subr.mxu0 0.0
    %82 = vmatpush1.msra.mxu0 0.0
    %83 = vmatprep.subr.mxu0 0.0
    %84 = vmatpush1.msra.mxu0 0.0
    %85 = vmatprep.subr.mxu0 0.0
    %86 = vmatpush1.msra.mxu0 0.0
    %87 = vmatprep.subr.mxu0 0.0
    %88 = vmatpush1.msra.mxu0 0.0
    %89 = vmatprep.subr.mxu0 0.0
    %90 = vmatpush1.msra.mxu0 0.0
    %91 = vmatprep.subr.mxu0 0.0
    %92 = vmatpush1.msra.mxu0 0.0
    %93 = vmatprep.subr.mxu0 0.0
    %94 = vmatpush1.msra.mxu0 0.0
    %95 = vmatprep.subr.mxu0 0.0
    %96 = vmatpush1.msra.mxu0 0.0
    %97 = vmatprep.subr.mxu0 0.0
    %98 = vmatpush1.msra.mxu0 0.0
    %99 = vmatprep.subr.mxu0 0.0
    %100 = vmatpush1.msra.mxu0 0.0
    %101 = vmatprep.subr.mxu0 0.0
    %102 = vmatpush1.msra.mxu0 0.0
    %103 = vmatprep.subr.mxu0 0.0
    %104 = vmatpush1.msra.mxu0 0.0
    %105 = vmatprep.subr.mxu0 0.0
    %106 = vmatpush1.msra.mxu0 0.0
    %107 = vmatprep.subr.mxu0 0.0
    %108 = vmatpush1.msra.mxu0 0.0
    %109 = vmatprep.subr.mxu0 0.0
    %110 = vmatpush1.msra.mxu0 0.0
    %111 = vmatprep.subr.mxu0 0.0
    %112 = vmatpush1.msra.mxu0 0.0
    %113 = vmatprep.subr.mxu0 0.0
    %114 = vmatpush1.msra.mxu0 0.0
    %115 = vmatprep.subr.mxu0 0.0
    %116 = vmatpush1.msra.mxu0 0.0
    %117 = vmatprep.subr.mxu0 0.0
    %118 = vmatpush1.msra.mxu0 0.0
    %119 = vmatprep.subr.mxu0 0.0
    %120 = vmatpush1.msra.mxu0 0.0
    %121 = vmatprep.subr.mxu0 0.0
    %122 = vmatpush1.msra.mxu0 0.0
    %123 = vmatprep.subr.mxu0 0.0
    %124 = vmatpush1.msra.mxu0 0.0
    %125 = vmatprep.mubr.f32.mxu0 0.0
    %126 = vmatmul.mubr.f32.gmra.mrb[0].mxu0 %v56
    %v127 = vpop.f32.mrb[0].mxu0
    %v128 = vadd.f32 %v52, %v127
    %v129 = vpop.f32.mrb[0].mxu0
    %130 = vmatprep.mubr.f32.mxu0 0.0
    %131 = vmatmul.mubr.f32.gmra.mrb[0].mxu0 %v59
    %v132 = vpop.f32.mrb[0].mxu0
    %v133 = vadd.f32 %v52, %v132
    %v134 = vpop.f32.mrb[0].mxu0
    %135 = vdwg.mxu0
    %v136 = vmax.f32 %v128, 0.0
    %v137 = vmax.f32 %v133, 0.0
    %vm138 = vcmask 261120
    %139 = vst.msk [vmem:[#allocation7] sm:$0xff] %vm138, %v136
    %140 = vst.msk [vmem:[#allocation7 + $0x8] sm:$0xff] %vm138, %v137
    // Predicated region
    $region22: #{tpu_custom_call.1} parent=1 // pred_check
      _
    $region23: #{tpu_custom_call.1} parent=1 // pred_check_branch
      %142 = sbr.rel (0) target = $region25
    $region24: #{tpu_custom_call.1} parent=1 // pred_region
      %s144 = ssub.s32 256, 256
      %145 = vsyncadd [#allocation4], %s144
      %s146 = sshll.u32 [#allocation7], 4
      %s147 = int_to_ptr.vmem [resolvable:$true] %s146
      %152 = dma.vmem_to_hbm [thread:$0]  %s147, 256, %s3, [#allocation4], 128, 128, 8
    $region25: #{tpu_custom_call.1} parent=1 // pred_fallthru
      _
    // Predicated region
    $region26: #{tpu_custom_call.1} parent=1 // pred_check
      _
    $region27: #{tpu_custom_call.1} parent=1 // pred_check_branch
      %154 = sbr.rel (0) target = $region29
    $region28: #{tpu_custom_call.1} parent=1 // pred_region
      %155 = dma.done [#allocation4], 256
    $region29: #{tpu_custom_call.1} parent=1 // pred_fallthru
      _
    %156 = vsyncpa [#allocation3], 1
    %157 = vsyncpa [#allocation6], 1
    %158 = vsyncpa [#allocation4], 1

</llo_original>
